<compile_context>
chip_gen: v7x
topology: tpu7x:2x2x1
jax: 0.10.0
libtpu: 0.0.40
codegen_flags: <defaults>
</compile_context>

<pallas_src>
import jax
import jax.numpy as jnp
from jax.experimental import pallas as pl
from jax.experimental.pallas import tpu as pltpu

_LANES = 128
_PERIOD = 104          # lcm(8, 13); 13*128 = lcm(26, 128) -> weight pattern period (rows)
_PAD_LOGIT = -1.0e4    # padded logit (with target 0) -> exactly zero loss, no mask needed


def _round_up(a, b):
    return ((a + b - 1) // b) * b


def _make_bce_kernel(num_chunks):
    """One (num_chunks*104, 128) tile: unweighted stable BCE reduced into a (104, 128)
    class-bucket partial sum (weights applied in the wrapper epilogue)."""

    def kernel(pred_ref, target_ref, out_ref):
        acc = jnp.zeros((_PERIOD, _LANES), jnp.float32)
        for g in range(num_chunks):              # static slices -> zero-cost ref views
            x = pred_ref[g * _PERIOD:(g + 1) * _PERIOD, :].astype(jnp.float32)
            t = target_ref[g * _PERIOD:(g + 1) * _PERIOD, :].astype(jnp.float32)
            # Stable BCE-with-logits:
            #   -(t*logsig(x) + (1-t)*logsig(-x)) == max(x,0) - x*t + log1p(exp(-|x|))
            # TODO(synk): on v6e/v7x the exp/log1p pair could run in bf16 on the EUP if
            # the accuracy budget allows; kept f32 here (required on v5e anyway).
            acc = acc + (jnp.maximum(x, 0.0) - x * t
                         + jnp.log1p(jnp.exp(-jnp.abs(x))))
        out_ref[0] = acc

    return kernel


def cross_entropy_loss(pred, target, weights=None, *,
                       stream_dtype=jnp.bfloat16, max_rows_per_tile=None):
    """Weighted BCE-with-logits, mean reduction. pred/target: (B, C); weights: (1, C)."""
    B, C = pred.shape
    if weights is None:
        weights = jnp.ones((1, C), dtype=jnp.float32)
    assert (_PERIOD * _LANES) % C == 0, "class count must divide the 104x128 bucket"

    n = B * C
    rows_valid = pl.cdiv(n, _LANES)

    # ~1 MiB payload per input per grid step (review: >=4096 flattened rows); halved
    # tile for 4-byte streams so 2 inputs x 2 pipeline buffers + f32 temporaries stay
    # well inside a 32 MiB scoped-VMEM budget on every generation (v7x: 64 MiB phys).
    if max_rows_per_tile is None:
        max_rows_per_tile = 4160 if jnp.dtype(stream_dtype).itemsize <= 2 else 2080
    max_rows_per_tile = _round_up(max_rows_per_tile, _PERIOD)

    tb = min(max_rows_per_tile, _round_up(rows_valid, _PERIOD))
    rows_pad = _round_up(rows_valid, tb)
    num_tiles = rows_pad // tb
    num_chunks = tb // _PERIOD
    total_pad = rows_pad * _LANES

    # Lane-dense flattening. Padded logits are a large negative with target 0:
    # max(x,0)=0, -x*t=0, log1p(exp(-1e4))=0 -> contributes exactly zero loss.
    pred_flat = jnp.pad(pred.reshape(-1).astype(stream_dtype), (0, total_pad - n),
                        constant_values=_PAD_LOGIT).reshape(rows_pad, _LANES)
    target_flat = jnp.pad(target.reshape(-1).astype(stream_dtype), (0, total_pad - n),
                          constant_values=0).reshape(rows_pad, _LANES)

    itemsize = jnp.dtype(stream_dtype).itemsize
    cost = pl.CostEstimate(
        flops=6 * total_pad,
        transcendentals=2 * total_pad,
        bytes_accessed=2 * itemsize * total_pad + 4 * num_tiles * _PERIOD * _LANES,
    )

    partials = pl.pallas_call(
        _make_bce_kernel(num_chunks),
        out_shape=jax.ShapeDtypeStruct((num_tiles, _PERIOD, _LANES), jnp.float32),
        grid_spec=pltpu.PrefetchScalarGridSpec(
            num_scalar_prefetch=0,
            grid=(num_tiles,),
            in_specs=[
                pl.BlockSpec((tb, _LANES), lambda i: (i, 0)),
                pl.BlockSpec((tb, _LANES), lambda i: (i, 0)),
            ],
            out_specs=pl.BlockSpec((1, _PERIOD, _LANES), lambda i: (i, 0, 0)),
        ),
        compiler_params=pltpu.CompilerParams(
            dimension_semantics=("parallel",),     # independent tiles -> both v7x TCs
            vmem_limit_bytes=32 * 1024 * 1024),
        cost_estimate=cost,
    )(pred_flat, target_flat)

    # Weighted reduction of the tiny (104, 128) class buckets (plain JAX epilogue).
    # Flat element e has class e % C; bucket (row % 104, lane) -> class is well defined
    # because 104*128 is a multiple of C. Mean scale 1/(B*C) folded into the weights.
    w_scaled = weights.reshape(-1).astype(jnp.float32) / jnp.float32(B * C)
    bucket_class = (jnp.arange(_PERIOD, dtype=jnp.int32)[:, None] * _LANES
                    + jnp.arange(_LANES, dtype=jnp.int32)[None, :]) % C
    w_slab = w_scaled[bucket_class]                               # (104, 128)
    return jnp.sum(jnp.sum(partials, axis=0) * w_slab)


def prepare_dynamic_weights(target):
    """Plain-JAX port of prepare_dynamic_weights (tiny (1, C) computation; no kernel)."""
    stats = jnp.sum(target.astype(jnp.float32), axis=0, keepdims=True)   # (1, C)
    return jnp.where(stats != 0, 1.0 / jnp.log(stats + 1.2), 1.0e-4)


def make_weights(weight_type, target=None):
    if weight_type == "mean":
        return jnp.ones((1, 26), dtype=jnp.float32) / 26.0
    if weight_type == "static":
        vals = [0.1435, 0.187, 0.1692, 0.1165, 0.1949, 0.1204, 0.1728, 0.1372,
                0.162, 0.154, 0.1987, 0.1057, 0.1482, 0.1192, 0.159, 0.1929,
                0.1158, 0.1907, 0.1345, 0.1307, 0.1665, 0.1698, 0.1797, 0.1657,
                0.152, 0.1537]
        return jnp.array(vals, dtype=jnp.float32)[None, :]
    if weight_type == "dynamic":
        return prepare_dynamic_weights(target)
    return None


def reference_loss(pred, target, weights):
    lsp = jax.nn.log_sigmoid(pred)
    lsn = jax.nn.log_sigmoid(-pred)
    loss = -(target * lsp + (1.0 - target) * lsn)
    if weights is not None:
        loss = loss * weights
    return jnp.mean(loss)


if __name__ == "__main__":
    key = jax.random.PRNGKey(0)
    k1, k2 = jax.random.split(key)

    B, C = 8, 26  # batch of 8 samples, 26 emotion categories
    pred = jax.random.normal(k1, (B, C), dtype=jnp.float32)
    target = (jax.random.uniform(k2, (B, C)) > 0.5).astype(jnp.float32)

    for wt in ("mean", "static", "dynamic"):
        w = make_weights(wt, target)

        # f32 streaming path: matches the PyTorch float32 module semantics.
        out = jax.block_until_ready(
            cross_entropy_loss(pred, target, w, stream_dtype=jnp.float32))
        ref = reference_loss(pred, target, w)
        assert jnp.allclose(out, ref, rtol=1e-5, atol=1e-6), (wt, "f32", out, ref)

        # bf16 streaming (default; halves HBM traffic). Compare against the same math
        # on the bf16-cast inputs (kernel upcasts to f32 internally).
        out_bf = jax.block_until_ready(cross_entropy_loss(pred, target, w))
        ref_bf = reference_loss(pred.astype(jnp.bfloat16).astype(jnp.float32),
                                target.astype(jnp.bfloat16).astype(jnp.float32), w)
        assert jnp.allclose(out_bf, ref_bf, rtol=1e-4, atol=1e-6), (wt, "bf16", out_bf, ref_bf)

    # Multi-tile grid path (force small tiles so the demo exercises >1 grid step).
    B2 = 600
    k3, k4 = jax.random.split(k2)
    pred2 = jax.random.normal(k3, (B2, C), dtype=jnp.float32)
    target2 = (jax.random.uniform(k4, (B2, C)) > 0.5).astype(jnp.float32)
    w2 = make_weights("static")
    out2 = jax.block_until_ready(
        cross_entropy_loss(pred2, target2, w2, stream_dtype=jnp.float32,
                           max_rows_per_tile=104))
    ref2 = reference_loss(pred2, target2, w2)
    assert jnp.allclose(out2, ref2, rtol=1e-4, atol=1e-6), ("multi-tile", out2, ref2)

    print("KERNEL_OK")
</pallas_src>

<mosaic_0001>
module attributes {stable_mosaic.version = 11 : i64} {
  func.func @kernel(%arg0: i32, %arg1: memref<104x128xf32, #tpu.memory_space<vmem>>, %arg2: memref<104x128xf32, #tpu.memory_space<vmem>>, %arg3: memref<1x104x128xf32, #tpu.memory_space<vmem>>) attributes {dimension_semantics = [#tpu.dimension_semantics<parallel>], iteration_bounds = array<i64: 1>, scalar_prefetch = 0 : i64, scratch_operands = 0 : i64, tpu.core_type = #tpu.core_type<tc>, window_params = [{transform_indices = @transform_0, window_bounds = array<i64: 104, 128>}, {transform_indices = @transform_1, window_bounds = array<i64: 104, 128>}, {transform_indices = @transform_2, window_bounds = array<i64: 1, 104, 128>}]} {
    %cst = arith.constant 0.000000e+00 : f32
    %0 = vector.broadcast %cst : f32 to vector<104x128xf32>
    %c0 = arith.constant 0 : index
    %c0_0 = arith.constant 0 : index
    %1 = vector.load %arg1[%c0, %c0_0] : memref<104x128xf32, #tpu.memory_space<vmem>>, vector<104x128xf32>
    %c0_1 = arith.constant 0 : index
    %c0_2 = arith.constant 0 : index
    %2 = vector.load %arg2[%c0_1, %c0_2] : memref<104x128xf32, #tpu.memory_space<vmem>>, vector<104x128xf32>
    %cst_3 = arith.constant 0.000000e+00 : f32
    %3 = vector.broadcast %cst_3 : f32 to vector<104x128xf32>
    %4 = arith.maximumf %1, %3 : vector<104x128xf32>
    %5 = arith.mulf %1, %2 : vector<104x128xf32>
    %6 = arith.subf %4, %5 : vector<104x128xf32>
    %7 = math.absf %1 : vector<104x128xf32>
    %cst_4 = arith.constant 0.000000e+00 : f32
    %8 = vector.broadcast %cst_4 : f32 to vector<104x128xf32>
    %9 = arith.subf %8, %7 : vector<104x128xf32>
    %10 = math.exp %9 : vector<104x128xf32>
    %11 = math.log1p %10 : vector<104x128xf32>
    %12 = arith.addf %6, %11 : vector<104x128xf32>
    %13 = arith.addf %0, %12 : vector<104x128xf32>
    %c0_5 = arith.constant 0 : index
    %c0_6 = arith.constant 0 : index
    %c0_7 = arith.constant 0 : index
    %14 = vector.load %arg3[%c0_5, %c0_6, %c0_7] : memref<1x104x128xf32, #tpu.memory_space<vmem>>, vector<1x104x128xf32>
    %15 = vector.shape_cast %14 : vector<1x104x128xf32> to vector<104x128xf32>
    %16 = vector.shape_cast %13 : vector<104x128xf32> to vector<1x104x128xf32>
    tpu.vector_store %arg3[%c0_5, %c0_6, %c0_7], %16 {strides = array<i32>} : memref<1x104x128xf32, #tpu.memory_space<vmem>>, vector<1x104x128xf32>,
    return
  }
  func.func @transform_0(%arg0: i32) -> (i32, i32) {
    %c0_i32 = arith.constant 0 : i32
    %c0_i32_0 = arith.constant 0 : i32
    return %arg0, %c0_i32 : i32, i32
  }
  func.func @transform_1(%arg0: i32) -> (i32, i32) {
    %c0_i32 = arith.constant 0 : i32
    %c0_i32_0 = arith.constant 0 : i32
    return %arg0, %c0_i32 : i32, i32
  }
  func.func @transform_2(%arg0: i32) -> (i32, i32, i32) {
    %c0_i32 = arith.constant 0 : i32
    %c0_i32_0 = arith.constant 0 : i32
    %c0_i32_1 = arith.constant 0 : i32
    return %arg0, %c0_i32, %c0_i32_0 : i32, i32, i32
  }
}

</mosaic_0001>

<llo_original>
// kernel: tpu_custom_call.1
$region0: #{tpu_custom_call.1}
  #allocation0 [shape = 'u32[]', space=smem, size = 0x4, offset = 0x4, fixed_abs, tag = 'smem constant byte address 0x4 - core index']
  #allocation1 [shape = 'u32[144,128]{1,0:T(1,128)}', space=vmem, size = 0x12000, scoped, tag = 'internal scratch']
  %s0 = inlined_call_operand.hbm [shape: f32[104,128], index: 0, kind: input, shape index: {}]
  %s1 = inlined_call_operand.hbm [shape: f32[104,128], index: 1, kind: input, shape index: {}]
  %s2 = inlined_call_operand.hbm [shape: f32[1,104,128], index: 2, kind: output, shape index: {}]
  %s3 = sld [smem:[#allocation0]]
  $region26: #{tpu_custom_call.1} parent=0
    _
  %s5 = ssub.s32 1, %s3
  %s6 = scalar_select 0, %s5, %s3
  $region1: #{tpu_custom_call.1} parent=0
    #allocation2 [shape = 'u8[53248]{0}', space=vmem, size = 0xd000, scoped, tag = 'input window, operand 0, single buffered']
    #allocation3 [shape = 's32[1]{0}', space=sflag, size = 0x4, scoped, tag = 'scoped memory for tpu_custom_call.1']
    #allocation4 [shape = 's32[1]{0}', space=sflag, size = 0x4, scoped, tag = 'scoped memory for tpu_custom_call.1']
    #allocation5 [shape = 'u8[53248]{0}', space=vmem, size = 0xd000, scoped, tag = 'input window, operand 1, single buffered']
    #allocation6 [shape = 's32[1]{0}', space=sflag, size = 0x4, scoped, tag = 'scoped memory for tpu_custom_call.1']
    #allocation7 [shape = 'u8[53248]{0}', space=vmem, size = 0xd000, scoped, tag = 'output window, operand 0, single buffered']
    %7 = vsyncpa [#allocation3], 0
    %8 = vsyncpa [#allocation6], 0
    %9 = vsyncpa [#allocation4], 0
    // Predicated region
    $region2: #{tpu_custom_call.1} parent=1 // pred_check
      _
    $region3: #{tpu_custom_call.1} parent=1 // pred_check_branch
      %11 = sbr.rel (0) target = $region5
    $region4: #{tpu_custom_call.1} parent=1 // pred_region
      %s13 = ssub.s32 1664, 1664
      %14 = vsyncadd [#allocation3], %s13
      %s15 = sshll.u32 [#allocation2], 4
      %s16 = int_to_ptr.vmem [resolvable:$true] %s15
      %21 = dma.hbm_to_vmem [thread:$0]  %s0, 1664, %s16, [#allocation3], 128, 128, 8
    $region5: #{tpu_custom_call.1} parent=1 // pred_fallthru
      _
    // Predicated region
    $region6: #{tpu_custom_call.1} parent=1 // pred_check
      _
    $region7: #{tpu_custom_call.1} parent=1 // pred_check_branch
      %23 = sbr.rel (0) target = $region9
    $region8: #{tpu_custom_call.1} parent=1 // pred_region
      %s25 = ssub.s32 1664, 1664
      %26 = vsyncadd [#allocation6], %s25
      %s27 = sshll.u32 [#allocation5], 4
      %s28 = int_to_ptr.vmem [resolvable:$true] %s27
      %33 = dma.hbm_to_vmem [thread:$0]  %s1, 1664, %s28, [#allocation6], 128, 128, 8
    $region9: #{tpu_custom_call.1} parent=1 // pred_fallthru
      _
    // Predicated region
    $region10: #{tpu_custom_call.1} parent=1 // pred_check
      _
    $region11: #{tpu_custom_call.1} parent=1 // pred_check_branch
      %35 = sbr.rel (0) target = $region13
    $region12: #{tpu_custom_call.1} parent=1 // pred_region
      %36 = dma.done [#allocation3], 1664
    $region13: #{tpu_custom_call.1} parent=1 // pred_fallthru
      _
    // Predicated region
    $region14: #{tpu_custom_call.1} parent=1 // pred_check
      _
    $region15: #{tpu_custom_call.1} parent=1 // pred_check_branch
      %38 = sbr.rel (0) target = $region17
    $region16: #{tpu_custom_call.1} parent=1 // pred_region
      %39 = dma.done [#allocation6], 1664
    $region17: #{tpu_custom_call.1} parent=1 // pred_fallthru
      _
    %v40 = vld [vmem:[#allocation2] sm:$0xff]
    %v41 = vld [vmem:[#allocation2 + $0x8] sm:$0xff]
    %v42 = vld [vmem:[#allocation2 + $0x10] sm:$0xff]
    %v43 = vld [vmem:[#allocation2 + $0x18] sm:$0xff]
    %v44 = vld [vmem:[#allocation2 + $0x20] sm:$0xff]
    %v45 = vld [vmem:[#allocation2 + $0x28] sm:$0xff]
    %v46 = vld [vmem:[#allocation2 + $0x30] sm:$0xff]
    %v47 = vld [vmem:[#allocation2 + $0x38] sm:$0xff]
    %v48 = vld [vmem:[#allocation2 + $0x40] sm:$0xff]
    %v49 = vld [vmem:[#allocation2 + $0x48] sm:$0xff]
    %v50 = vld [vmem:[#allocation2 + $0x50] sm:$0xff]
    %v51 = vld [vmem:[#allocation2 + $0x58] sm:$0xff]
    %v52 = vld [vmem:[#allocation2 + $0x60] sm:$0xff]
    %v53 = vld [vmem:[#allocation5] sm:$0xff]
    %v54 = vld [vmem:[#allocation5 + $0x8] sm:$0xff]
    %v55 = vld [vmem:[#allocation5 + $0x10] sm:$0xff]
    %v56 = vld [vmem:[#allocation5 + $0x18] sm:$0xff]
    %v57 = vld [vmem:[#allocation5 + $0x20] sm:$0xff]
    %v58 = vld [vmem:[#allocation5 + $0x28] sm:$0xff]
    %v59 = vld [vmem:[#allocation5 + $0x30] sm:$0xff]
    %v60 = vld [vmem:[#allocation5 + $0x38] sm:$0xff]
    %v61 = vld [vmem:[#allocation5 + $0x40] sm:$0xff]
    %v62 = vld [vmem:[#allocation5 + $0x48] sm:$0xff]
    %v63 = vld [vmem:[#allocation5 + $0x50] sm:$0xff]
    %v64 = vld [vmem:[#allocation5 + $0x58] sm:$0xff]
    %v65 = vld [vmem:[#allocation5 + $0x60] sm:$0xff]
    %v66 = vmax.f32 %v40, 0.0
    %v67 = vmax.f32 %v41, 0.0
    %v68 = vmax.f32 %v42, 0.0
    %v69 = vmax.f32 %v43, 0.0
    %v70 = vmax.f32 %v44, 0.0
    %v71 = vmax.f32 %v45, 0.0
    %v72 = vmax.f32 %v46, 0.0
    %v73 = vmax.f32 %v47, 0.0
    %v74 = vmax.f32 %v48, 0.0
    %v75 = vmax.f32 %v49, 0.0
    %v76 = vmax.f32 %v50, 0.0
    %v77 = vmax.f32 %v51, 0.0
    %v78 = vmax.f32 %v52, 0.0
    %v79 = vmul.f32 %v40, %v53
    %v80 = vmul.f32 %v41, %v54
    %v81 = vmul.f32 %v42, %v55
    %v82 = vmul.f32 %v43, %v56
    %v83 = vmul.f32 %v44, %v57
    %v84 = vmul.f32 %v45, %v58
    %v85 = vmul.f32 %v46, %v59
    %v86 = vmul.f32 %v47, %v60
    %v87 = vmul.f32 %v48, %v61
    %v88 = vmul.f32 %v49, %v62
    %v89 = vmul.f32 %v50, %v63
    %v90 = vmul.f32 %v51, %v64
    %v91 = vmul.f32 %v52, %v65
    %v92 = vsub.f32 %v66, %v79
    %v93 = vsub.f32 %v67, %v80
    %v94 = vsub.f32 %v68, %v81
    %v95 = vsub.f32 %v69, %v82
    %v96 = vsub.f32 %v70, %v83
    %v97 = vsub.f32 %v71, %v84
    %v98 = vsub.f32 %v72, %v85
    %v99 = vsub.f32 %v73, %v86
    %v100 = vsub.f32 %v74, %v87
    %v101 = vsub.f32 %v75, %v88
    %v102 = vsub.f32 %v76, %v89
    %v103 = vsub.f32 %v77, %v90
    %v104 = vsub.f32 %v78, %v91
    %v105 = vand.u32 2147483647, %v40
    %v106 = vand.u32 2147483647, %v41
    %v107 = vand.u32 2147483647, %v42
    %v108 = vand.u32 2147483647, %v43
    %v109 = vand.u32 2147483647, %v44
    %v110 = vand.u32 2147483647, %v45
    %v111 = vand.u32 2147483647, %v46
    %v112 = vand.u32 2147483647, %v47
    %v113 = vand.u32 2147483647, %v48
    %v114 = vand.u32 2147483647, %v49
    %v115 = vand.u32 2147483647, %v50
    %v116 = vand.u32 2147483647, %v51
    %v117 = vand.u32 2147483647, %v52
    %v118 = vsub.f32 0.0, %v105
    %v119 = vsub.f32 0.0, %v106
    %v120 = vsub.f32 0.0, %v107
    %v121 = vsub.f32 0.0, %v108
    %v122 = vsub.f32 0.0, %v109
    %v123 = vsub.f32 0.0, %v110
    %v124 = vsub.f32 0.0, %v111
    %v125 = vsub.f32 0.0, %v112
    %v126 = vsub.f32 0.0, %v113
    %v127 = vsub.f32 0.0, %v114
    %v128 = vsub.f32 0.0, %v115
    %v129 = vsub.f32 0.0, %v116
    %v130 = vsub.f32 0.0, %v117
    %v131 = vmul.f32 %v118, 1.442695
    %v132 = vpow.pop %v131
    %v133 = vmul.f32 %v119, 1.442695
    %v134 = vpow.pop %v133
    %v135 = vmul.f32 %v120, 1.442695
    %v136 = vpow.pop %v135
    %v137 = vmul.f32 %v121, 1.442695
    %v138 = vpow.pop %v137
    %v139 = vmul.f32 %v122, 1.442695
    %v140 = vpow.pop %v139
    %v141 = vmul.f32 %v123, 1.442695
    %v142 = vpow.pop %v141
    %v143 = vmul.f32 %v124, 1.442695
    %v144 = vpow.pop %v143
    %v145 = vmul.f32 %v125, 1.442695
    %v146 = vpow.pop %v145
    %v147 = vmul.f32 %v126, 1.442695
    %v148 = vpow.pop %v147
    %v149 = vmul.f32 %v127, 1.442695
    %v150 = vpow.pop %v149
    %v151 = vmul.f32 %v128, 1.442695
    %v152 = vpow.pop %v151
    %v153 = vmul.f32 %v129, 1.442695
    %v154 = vpow.pop %v153
    %v155 = vmul.f32 %v130, 1.442695
    %v156 = vpow.pop %v155
    %v157 = vadd.f32 %v132, 1.0
    %v158 = vlog2.pop %v157
    %v159 = vmul.f32 %v158, 0.6931472
    %v160 = vmul.f32 -0.5, %v132
    %v161 = vadd.f32 %v160, 1.0
    %v162 = vmul.f32 %v161, %v132
    %v163 = vand.u32 2147483647, %v132
    %vm164 = vcmp.lt.f32.partialorder %v163, 0.0004427343
    %v165 = vsel %vm164, %v162, %v159
    %v166 = vadd.f32 %v134, 1.0
    %v167 = vlog2.pop %v166
    %v168 = vmul.f32 %v167, 0.6931472
    %v169 = vmul.f32 -0.5, %v134
    %v170 = vadd.f32 %v169, 1.0
    %v171 = vmul.f32 %v170, %v134
    %v172 = vand.u32 2147483647, %v134
    %vm173 = vcmp.lt.f32.partialorder %v172, 0.0004427343
    %v174 = vsel %vm173, %v171, %v168
    %v175 = vadd.f32 %v136, 1.0
    %v176 = vlog2.pop %v175
    %v177 = vmul.f32 %v176, 0.6931472
    %v178 = vmul.f32 -0.5, %v136
    %v179 = vadd.f32 %v178, 1.0
    %v180 = vmul.f32 %v179, %v136
    %v181 = vand.u32 2147483647, %v136
    %vm182 = vcmp.lt.f32.partialorder %v181, 0.0004427343
    %v183 = vsel %vm182, %v180, %v177
    %v184 = vadd.f32 %v138, 1.0
    %v185 = vlog2.pop %v184
    %v186 = vmul.f32 %v185, 0.6931472
    %v187 = vmul.f32 -0.5, %v138
    %v188 = vadd.f32 %v187, 1.0
    %v189 = vmul.f32 %v188, %v138
    %v190 = vand.u32 2147483647, %v138
    %vm191 = vcmp.lt.f32.partialorder %v190, 0.0004427343
    %v192 = vsel %vm191, %v189, %v186
    %v193 = vadd.f32 %v140, 1.0
    %v194 = vlog2.pop %v193
    %v195 = vmul.f32 %v194, 0.6931472
    %v196 = vmul.f32 -0.5, %v140
    %v197 = vadd.f32 %v196, 1.0
    %v198 = vmul.f32 %v197, %v140
    %v199 = vand.u32 2147483647, %v140
    %vm200 = vcmp.lt.f32.partialorder %v199, 0.0004427343
    %v201 = vsel %vm200, %v198, %v195
    %v202 = vadd.f32 %v142, 1.0
    %v203 = vlog2.pop %v202
    %v204 = vmul.f32 %v203, 0.6931472
    %v205 = vmul.f32 -0.5, %v142
    %v206 = vadd.f32 %v205, 1.0
    %v207 = vmul.f32 %v206, %v142
    %v208 = vand.u32 2147483647, %v142
    %vm209 = vcmp.lt.f32.partialorder %v208, 0.0004427343
    %v210 = vsel %vm209, %v207, %v204
    %v211 = vadd.f32 %v144, 1.0
    %v212 = vlog2.pop %v211
    %v213 = vmul.f32 %v212, 0.6931472
    %v214 = vmul.f32 -0.5, %v144
    %v215 = vadd.f32 %v214, 1.0
    %v216 = vmul.f32 %v215, %v144
    %v217 = vand.u32 2147483647, %v144
    %vm218 = vcmp.lt.f32.partialorder %v217, 0.0004427343
    %v219 = vsel %vm218, %v216, %v213
    %v220 = vadd.f32 %v146, 1.0
    %v221 = vlog2.pop %v220
    %v222 = vmul.f32 %v221, 0.6931472
    %v223 = vmul.f32 -0.5, %v146
    %v224 = vadd.f32 %v223, 1.0
    %v225 = vmul.f32 %v224, %v146
    %v226 = vand.u32 2147483647, %v146
    %vm227 = vcmp.lt.f32.partialorder %v226, 0.0004427343
    %v228 = vsel %vm227, %v225, %v222
    %v229 = vadd.f32 %v148, 1.0
    %v230 = vlog2.pop %v229
    %v231 = vmul.f32 %v230, 0.6931472
    %v232 = vmul.f32 -0.5, %v148
    %v233 = vadd.f32 %v232, 1.0
    %v234 = vmul.f32 %v233, %v148
    %v235 = vand.u32 2147483647, %v148
    %vm236 = vcmp.lt.f32.partialorder %v235, 0.0004427343
    %v237 = vsel %vm236, %v234, %v231
    %v238 = vadd.f32 %v150, 1.0
    %v239 = vlog2.pop %v238
    %v240 = vmul.f32 %v239, 0.6931472
    %v241 = vmul.f32 -0.5, %v150
    %v242 = vadd.f32 %v241, 1.0
    %v243 = vmul.f32 %v242, %v150
    %v244 = vand.u32 2147483647, %v150
    %vm245 = vcmp.lt.f32.partialorder %v244, 0.0004427343
    %v246 = vsel %vm245, %v243, %v240
    %v247 = vadd.f32 %v152, 1.0
    %v248 = vlog2.pop %v247
    %v249 = vmul.f32 %v248, 0.6931472
    %v250 = vmul.f32 -0.5, %v152
    %v251 = vadd.f32 %v250, 1.0
    %v252 = vmul.f32 %v251, %v152
    %v253 = vand.u32 2147483647, %v152
    %vm254 = vcmp.lt.f32.partialorder %v253, 0.0004427343
    %v255 = vsel %vm254, %v252, %v249
    %v256 = vadd.f32 %v154, 1.0
    %v257 = vlog2.pop %v256
    %v258 = vmul.f32 %v257, 0.6931472
    %v259 = vmul.f32 -0.5, %v154
    %v260 = vadd.f32 %v259, 1.0
    %v261 = vmul.f32 %v260, %v154
    %v262 = vand.u32 2147483647, %v154
    %vm263 = vcmp.lt.f32.partialorder %v262, 0.0004427343
    %v264 = vsel %vm263, %v261, %v258
    %v265 = vadd.f32 %v156, 1.0
    %v266 = vlog2.pop %v265
    %v267 = vmul.f32 %v266, 0.6931472
    %v268 = vmul.f32 -0.5, %v156
    %v269 = vadd.f32 %v268, 1.0
    %v270 = vmul.f32 %v269, %v156
    %v271 = vand.u32 2147483647, %v156
    %vm272 = vcmp.lt.f32.partialorder %v271, 0.0004427343
    %v273 = vsel %vm272, %v270, %v267
    %v274 = vadd.f32 %v92, %v165
    %v275 = vadd.f32 %v93, %v174
    %v276 = vadd.f32 %v94, %v183
    %v277 = vadd.f32 %v95, %v192
    %v278 = vadd.f32 %v96, %v201
    %v279 = vadd.f32 %v97, %v210
    %v280 = vadd.f32 %v98, %v219
    %v281 = vadd.f32 %v99, %v228
    %v282 = vadd.f32 %v100, %v237
    %v283 = vadd.f32 %v101, %v246
    %v284 = vadd.f32 %v102, %v255
    %v285 = vadd.f32 %v103, %v264
    %v286 = vadd.f32 %v104, %v273
    %v287 = vadd.f32 %v274, 0.0
    %v288 = vadd.f32 %v275, 0.0
    %v289 = vadd.f32 %v276, 0.0
    %v290 = vadd.f32 %v277, 0.0
    %v291 = vadd.f32 %v278, 0.0
    %v292 = vadd.f32 %v279, 0.0
    %v293 = vadd.f32 %v280, 0.0
    %v294 = vadd.f32 %v281, 0.0
    %v295 = vadd.f32 %v282, 0.0
    %v296 = vadd.f32 %v283, 0.0
    %v297 = vadd.f32 %v284, 0.0
    %v298 = vadd.f32 %v285, 0.0
    %v299 = vadd.f32 %v286, 0.0
    %300 = vst [vmem:[#allocation7] sm:$0xff] %v287
    %301 = vst [vmem:[#allocation7 + $0x8] sm:$0xff] %v288
    %302 = vst [vmem:[#allocation7 + $0x10] sm:$0xff] %v289
    %303 = vst [vmem:[#allocation7 + $0x18] sm:$0xff] %v290
    %304 = vst [vmem:[#allocation7 + $0x20] sm:$0xff] %v291
    %305 = vst [vmem:[#allocation7 + $0x28] sm:$0xff] %v292
    %306 = vst [vmem:[#allocation7 + $0x30] sm:$0xff] %v293
    %307 = vst [vmem:[#allocation7 + $0x38] sm:$0xff] %v294
    %308 = vst [vmem:[#allocation7 + $0x40] sm:$0xff] %v295
    %309 = vst [vmem:[#allocation7 + $0x48] sm:$0xff] %v296
    %310 = vst [vmem:[#allocation7 + $0x50] sm:$0xff] %v297
    %311 = vst [vmem:[#allocation7 + $0x58] sm:$0xff] %v298
    %312 = vst [vmem:[#allocation7 + $0x60] sm:$0xff] %v299
    // Predicated region
    $region18: #{tpu_custom_call.1} parent=1 // pred_check
      _
    $region19: #{tpu_custom_call.1} parent=1 // pred_check_branch
      %314 = sbr.rel (0) target = $region21
    $region20: #{tpu_custom_call.1} parent=1 // pred_region
      %s316 = ssub.s32 1664, 1664
      %317 = vsyncadd [#allocation4], %s316
      %s318 = sshll.u32 [#allocation7], 4
      %s319 = int_to_ptr.vmem [resolvable:$true] %s318
      %324 = dma.vmem_to_hbm [thread:$0]  %s319, 1664, %s2, [#allocation4], 128, 128, 8
    $region21: #{tpu_custom_call.1} parent=1 // pred_fallthru
      _
    // Predicated region
    $region22: #{tpu_custom_call.1} parent=1 // pred_check
      _
    $region23: #{tpu_custom_call.1} parent=1 // pred_check_branch
      %326 = sbr.rel (0) target = $region25
    $region24: #{tpu_custom_call.1} parent=1 // pred_region
      %327 = dma.done [#allocation4], 1664
    $region25: #{tpu_custom_call.1} parent=1 // pred_fallthru
      _
    %328 = vsyncpa [#allocation3], 1
    %329 = vsyncpa [#allocation6], 1
    %330 = vsyncpa [#allocation4], 1

</llo_original>
